<compile_context>
chip_gen: v6e
topology: v6e:2x2x1
jax: 0.10.0
libtpu: 0.0.40
codegen_flags: <defaults>
</compile_context>

<pallas_src>
import jax
import jax.numpy as jnp
from jax.experimental import pallas as pl
from jax.experimental.pallas import tpu as pltpu


LANE = 128      # vreg lane width: all feature dims padded to a multiple of this
SUBLANE = 8     # f32 sublane height: batch tiles padded to a multiple of this


def _round_up(x, m):
    return ((x + m - 1) // m) * m


def _cdiv(a, b):
    return -(-a // b)


# ---------------------------------------------------------------------------
# Kernel body: 4 MXU dots (two narrow-K for layer 1, two 128x128), 2 ReLUs,
# one broadcast bias add.  Elementwise math / accumulation stays f32; only the
# MXU operands take the packed (possibly bf16) dtype.
# ---------------------------------------------------------------------------
def _fused_mlp_kernel(tok_ref, cond_ref, w1t_ref, w1c_ref, b1_ref,
                      w23_ref, w4_ref, out_ref):
    f32 = jnp.float32

    # layer 1 (both encoders on block-diagonal lanes) + bias + ReLU
    #   -> [h_t | h_c | 1 | 0]   (ones-carrier lane comes from b1 and survives ReLU)
    h1 = jnp.dot(tok_ref[...], w1t_ref[...], preferred_element_type=f32)
    h1 = h1 + jnp.dot(cond_ref[...], w1c_ref[...], preferred_element_type=f32)
    h1 = jnp.maximum(h1 + b1_ref[...], 0.0)

    # encoder layer 2 fused into decoder layer 1 (w23 = w2 @ w3, no ReLU between)
    #   -> [d | 1 | 0]
    h2 = jnp.dot(h1.astype(w23_ref.dtype), w23_ref[...], preferred_element_type=f32)
    h2 = jnp.maximum(h2, 0.0)

    # decoder layer 2 -> [out | 0], lane-dense store
    out_ref[...] = jnp.dot(h2.astype(w4_ref.dtype), w4_ref[...],
                           preferred_element_type=f32).astype(out_ref.dtype)


# ---------------------------------------------------------------------------
# Wrapper-side weight packing (done ONCE per parameter set, then cached by the
# caller): lane padding to 128, bias folding via a ones-carrier lane, and the
# host-side fusion w23 = w2 @ w3.
# ---------------------------------------------------------------------------
def pack_params(params, token_dim, condition_dim, hidden_dim,
                mxu_dtype=jnp.bfloat16):
    H = hidden_dim
    f32 = jnp.float32

    h2_p = _round_up(2 * H + 1, LANE)     # +1: ones-carrier lane after layer 1
    h_p = _round_up(H + 1, LANE)          # +1: ones-carrier lane after fused layer
    dout_p = _round_up(token_dim, LANE)
    ones_h2 = 2 * H
    ones_h = H

    # layer 1, split per input (token / condition), padded to the 2H+carrier lanes
    w1t = jnp.zeros((token_dim, h2_p), f32).at[:, :H].set(params["wt1"].astype(f32))
    w1c = jnp.zeros((condition_dim, h2_p), f32).at[:, H:2 * H].set(
        params["wc1"].astype(f32))
    b1 = jnp.zeros((1, h2_p), f32)
    b1 = b1.at[0, :H].set(params["bt1"][0])
    b1 = b1.at[0, H:2 * H].set(params["bc1"][0])
    b1 = b1.at[0, ones_h2].set(1.0)       # ones carrier (exact through ReLU/bf16)

    # layer 2 (block-diag wt2/wc2 + bias rows + carrier) — only used to form w23
    w2 = jnp.zeros((h2_p, h2_p), f32)
    w2 = w2.at[:H, :H].set(params["wt2"])
    w2 = w2.at[H:2 * H, H:2 * H].set(params["wc2"])
    w2 = w2.at[ones_h2, :H].set(params["bt2"][0])
    w2 = w2.at[ones_h2, H:2 * H].set(params["bc2"][0])
    w2 = w2.at[ones_h2, ones_h2].set(1.0)

    # decoder layer 1 on the [te | ce] lanes, bias row + carrier
    wd1 = jnp.concatenate([params["wd1t"], params["wd1c"]], axis=0)   # [2H, H]
    w3 = jnp.zeros((h2_p, h_p), f32)
    w3 = w3.at[:2 * H, :H].set(wd1)
    w3 = w3.at[ones_h2, :H].set(params["bd1"][0])
    w3 = w3.at[ones_h2, ones_h].set(1.0)

    # host-side fusion: no nonlinearity between encoder L2 and decoder L1
    w23 = w2 @ w3

    # decoder layer 2, bias row on the carrier lane
    w4 = jnp.zeros((h_p, dout_p), f32)
    w4 = w4.at[:H, :token_dim].set(params["wd2"])
    w4 = w4.at[ones_h, :token_dim].set(params["bd2"][0])

    # only MXU operands take mxu_dtype; the bias vector stays f32 (VPU add)
    return (w1t.astype(mxu_dtype), w1c.astype(mxu_dtype), b1,
            w23.astype(mxu_dtype), w4.astype(mxu_dtype))


def _batch_tiling(B, cap=2048, target_steps=2):
    """Pick (block_b, b_pad, steps).

    >= target_steps grid steps whenever there are enough rows (lets v7x shard
    the 'parallel' batch axis over both TCs), tiles capped at `cap` rows, and
    block_b chosen from cdiv(B, steps) so b_pad stays close to B.
    """
    b8 = _round_up(B, SUBLANE)
    steps = max(1, min(target_steps, b8 // SUBLANE))
    steps = max(steps, _cdiv(b8, cap))
    block_b = _round_up(_cdiv(B, steps), SUBLANE)
    steps = _cdiv(b8, block_b)
    b_pad = steps * block_b
    return block_b, b_pad, steps


@jax.jit
def fused_forward(token, condition, packed):
    """Fused forward; call with packed weights from pack_params (cached by caller)."""
    w1t, w1c, b1, w23, w4 = packed
    B, token_dim = token.shape
    _, condition_dim = condition.shape
    dout_p = w4.shape[1]
    mxu_dtype = w1t.dtype

    block_b, b_pad, steps = _batch_tiling(B)

    tok = token.astype(mxu_dtype)
    cond = condition.astype(mxu_dtype)
    if b_pad != B:
        tok = jnp.pad(tok, ((0, b_pad - B), (0, 0)))
        cond = jnp.pad(cond, ((0, b_pad - B), (0, 0)))

    def whole(arr):
        return pl.BlockSpec(arr.shape, lambda i: (0, 0))

    out_padded = pl.pallas_call(
        _fused_mlp_kernel,
        out_shape=jax.ShapeDtypeStruct((b_pad, dout_p), jnp.float32),
        grid_spec=pltpu.PrefetchScalarGridSpec(
            num_scalar_prefetch=0,
            grid=(steps,),
            in_specs=[
                # narrow inputs passed directly: block last dim == full width
                pl.BlockSpec((block_b, token_dim), lambda i: (i, 0)),
                pl.BlockSpec((block_b, condition_dim), lambda i: (i, 0)),
                whole(w1t), whole(w1c), whole(b1), whole(w23), whole(w4),
            ],
            out_specs=pl.BlockSpec((block_b, dout_p), lambda i: (i, 0)),
        ),
        compiler_params=pltpu.CompilerParams(
            # >1 step: shard batch axis across TCs on v7x; 1 step: plain loop.
            dimension_semantics=(("parallel",) if steps > 1 else ("arbitrary",)),
        ),
    )(tok, cond, w1t, w1c, b1, w23, w4)

    # Padded batch rows / padded lanes are sliced off inside this same jit so
    # the copy fuses with any downstream consumer.
    return out_padded[:B, :token_dim].astype(token.dtype)


# ---------------------------------------------------------------------------
# Parameter init (shapes match the PyTorch module) and pure-JAX reference.
# ---------------------------------------------------------------------------
def init_params(key, token_dim, condition_dim, hidden_dim):
    ks = jax.random.split(key, 10)

    def lin(k, fan_in, fan_out):
        bound = 1.0 / jnp.sqrt(fan_in)
        kw, kb = jax.random.split(k)
        w = jax.random.uniform(kw, (fan_in, fan_out), jnp.float32, -bound, bound)
        b = jax.random.uniform(kb, (1, fan_out), jnp.float32, -bound, bound)
        return w, b

    wt1, bt1 = lin(ks[0], token_dim, hidden_dim)
    wt2, bt2 = lin(ks[1], hidden_dim, hidden_dim)
    wc1, bc1 = lin(ks[2], condition_dim, hidden_dim)
    wc2, bc2 = lin(ks[3], hidden_dim, hidden_dim)
    wd1, bd1 = lin(ks[4], 2 * hidden_dim, hidden_dim)
    wd2, bd2 = lin(ks[5], hidden_dim, token_dim)

    return {
        "wt1": wt1, "bt1": bt1, "wt2": wt2, "bt2": bt2,
        "wc1": wc1, "bc1": bc1, "wc2": wc2, "bc2": bc2,
        "wd1t": wd1[:hidden_dim], "wd1c": wd1[hidden_dim:], "bd1": bd1,
        "wd2": wd2, "bd2": bd2,
    }


def reference_forward(token, condition, params):
    """Plain-JAX reference implementing the forward exactly."""
    te = jnp.maximum(token @ params["wt1"] + params["bt1"], 0.0) @ params["wt2"] + params["bt2"]
    ce = jnp.maximum(condition @ params["wc1"] + params["bc1"], 0.0) @ params["wc2"] + params["bc2"]
    combined = jnp.concatenate([te, ce], axis=-1)
    wd1 = jnp.concatenate([params["wd1t"], params["wd1c"]], axis=0)
    d = jnp.maximum(combined @ wd1 + params["bd1"], 0.0)
    return d @ params["wd2"] + params["bd2"]


if __name__ == "__main__":
    B = 16
    TOKEN_DIM = 16
    CONDITION_DIM = 8
    HIDDEN_DIM = 32

    key = jax.random.PRNGKey(0)
    k_tok, k_cond, k_params = jax.random.split(key, 3)

    token = jax.random.normal(k_tok, (B, TOKEN_DIM), jnp.float32)
    condition = jax.random.normal(k_cond, (B, CONDITION_DIM), jnp.float32)
    params = init_params(k_params, TOKEN_DIM, CONDITION_DIM, HIDDEN_DIM)

    ref = reference_forward(token, condition, params)

    # Packed weights are built once per parameter set and reused across calls.
    packed_f32 = pack_params(params, TOKEN_DIM, CONDITION_DIM, HIDDEN_DIM,
                             mxu_dtype=jnp.float32)
    packed_bf16 = pack_params(params, TOKEN_DIM, CONDITION_DIM, HIDDEN_DIM,
                              mxu_dtype=jnp.bfloat16)

    # f32 MXU path: bit-level close to the reference (w23 fusion only reorders
    # f32 rounding).
    out_f32 = jax.block_until_ready(fused_forward(token, condition, packed_f32))
    assert out_f32.shape == (B, TOKEN_DIM)
    assert jnp.allclose(out_f32, ref, atol=1e-4, rtol=1e-4), "f32 mismatch vs reference"

    # bf16-operand MXU path (fast path on v6e/v7x): f32 accumulation, looser
    # tolerance against the f32 reference.
    out_bf16 = jax.block_until_ready(fused_forward(token, condition, packed_bf16))
    assert out_bf16.shape == (B, TOKEN_DIM)
    assert jnp.allclose(out_bf16, ref, atol=5e-2, rtol=5e-2), "bf16 mismatch vs reference"

    print("KERNEL_OK")
</pallas_src>

<mosaic_0001>
module attributes {stable_mosaic.version = 11 : i64} {
  func.func @_fused_mlp_kernel(%arg0: i32, %arg1: memref<8x16xf32, #tpu.memory_space<vmem>>, %arg2: memref<8x8xf32, #tpu.memory_space<vmem>>, %arg3: memref<16x128xf32, #tpu.memory_space<vmem>>, %arg4: memref<8x128xf32, #tpu.memory_space<vmem>>, %arg5: memref<1x128xf32, #tpu.memory_space<vmem>>, %arg6: memref<128x128xf32, #tpu.memory_space<vmem>>, %arg7: memref<128x128xf32, #tpu.memory_space<vmem>>, %arg8: memref<8x128xf32, #tpu.memory_space<vmem>>) attributes {dimension_semantics = [#tpu.dimension_semantics<parallel>], iteration_bounds = array<i64: 2>, scalar_prefetch = 0 : i64, scratch_operands = 0 : i64, tpu.core_type = #tpu.core_type<tc>, window_params = [{transform_indices = @transform_0, window_bounds = array<i64: 8, 16>}, {transform_indices = @transform_1, window_bounds = array<i64: 8, 8>}, {pipeline_mode = #tpu.pipeline_mode<synchronous>, transform_indices = @transform_2, window_bounds = array<i64: 16, 128>}, {pipeline_mode = #tpu.pipeline_mode<synchronous>, transform_indices = @transform_3, window_bounds = array<i64: 8, 128>}, {pipeline_mode = #tpu.pipeline_mode<synchronous>, transform_indices = @transform_4, window_bounds = array<i64: 1, 128>}, {pipeline_mode = #tpu.pipeline_mode<synchronous>, transform_indices = @transform_5, window_bounds = array<i64: 128, 128>}, {pipeline_mode = #tpu.pipeline_mode<synchronous>, transform_indices = @transform_6, window_bounds = array<i64: 128, 128>}, {transform_indices = @transform_7, window_bounds = array<i64: 8, 128>}]} {
    %c0 = arith.constant 0 : index
    %c0_0 = arith.constant 0 : index
    %0 = vector.load %arg1[%c0, %c0_0] : memref<8x16xf32, #tpu.memory_space<vmem>>, vector<8x16xf32>
    %c0_1 = arith.constant 0 : index
    %c0_2 = arith.constant 0 : index
    %1 = vector.load %arg3[%c0_1, %c0_2] : memref<16x128xf32, #tpu.memory_space<vmem>>, vector<16x128xf32>
    %cst = arith.constant dense<0.000000e+00> : vector<8x128xf32>
    %2 = tpu.matmul %0, %1, %cst {dimension_numbers = #tpu.dot_dimension_numbers<[1], [0], [0], [1], [0, 0, 1, 1], [], []>} : vector<8x16xf32>, vector<16x128xf32>, vector<8x128xf32> -> vector<8x128xf32>
    %c0_3 = arith.constant 0 : index
    %c0_4 = arith.constant 0 : index
    %3 = vector.load %arg2[%c0_3, %c0_4] : memref<8x8xf32, #tpu.memory_space<vmem>>, vector<8x8xf32>
    %c0_5 = arith.constant 0 : index
    %c0_6 = arith.constant 0 : index
    %4 = vector.load %arg4[%c0_5, %c0_6] : memref<8x128xf32, #tpu.memory_space<vmem>>, vector<8x128xf32>
    %cst_7 = arith.constant dense<0.000000e+00> : vector<8x128xf32>
    %5 = tpu.matmul %3, %4, %cst_7 {dimension_numbers = #tpu.dot_dimension_numbers<[1], [0], [0], [1], [0, 0, 1, 1], [], []>} : vector<8x8xf32>, vector<8x128xf32>, vector<8x128xf32> -> vector<8x128xf32>
    %6 = arith.addf %2, %5 : vector<8x128xf32>
    %c0_8 = arith.constant 0 : index
    %c0_9 = arith.constant 0 : index
    %7 = vector.load %arg5[%c0_8, %c0_9] : memref<1x128xf32, #tpu.memory_space<vmem>>, vector<1x128xf32>
    %8 = vector.broadcast %7 : vector<1x128xf32> to vector<8x128xf32>
    %9 = arith.addf %6, %8 : vector<8x128xf32>
    %cst_10 = arith.constant 0.000000e+00 : f32
    %10 = vector.broadcast %cst_10 : f32 to vector<8x128xf32>
    %11 = arith.maximumf %9, %10 : vector<8x128xf32>
    %c0_11 = arith.constant 0 : index
    %c0_12 = arith.constant 0 : index
    %12 = vector.load %arg6[%c0_11, %c0_12] : memref<128x128xf32, #tpu.memory_space<vmem>>, vector<128x128xf32>
    %cst_13 = arith.constant dense<0.000000e+00> : vector<8x128xf32>
    %13 = tpu.matmul %11, %12, %cst_13 {dimension_numbers = #tpu.dot_dimension_numbers<[1], [0], [0], [1], [0, 0, 1, 1], [], []>} : vector<8x128xf32>, vector<128x128xf32>, vector<8x128xf32> -> vector<8x128xf32>
    %cst_14 = arith.constant 0.000000e+00 : f32
    %14 = vector.broadcast %cst_14 : f32 to vector<8x128xf32>
    %15 = arith.maximumf %13, %14 : vector<8x128xf32>
    %c0_15 = arith.constant 0 : index
    %c0_16 = arith.constant 0 : index
    %16 = vector.load %arg7[%c0_15, %c0_16] : memref<128x128xf32, #tpu.memory_space<vmem>>, vector<128x128xf32>
    %cst_17 = arith.constant dense<0.000000e+00> : vector<8x128xf32>
    %17 = tpu.matmul %15, %16, %cst_17 {dimension_numbers = #tpu.dot_dimension_numbers<[1], [0], [0], [1], [0, 0, 1, 1], [], []>} : vector<8x128xf32>, vector<128x128xf32>, vector<8x128xf32> -> vector<8x128xf32>
    %c0_18 = arith.constant 0 : index
    %c0_19 = arith.constant 0 : index
    %18 = vector.load %arg8[%c0_18, %c0_19] : memref<8x128xf32, #tpu.memory_space<vmem>>, vector<8x128xf32>
    tpu.vector_store %arg8[%c0_18, %c0_19], %17 {strides = array<i32>} : memref<8x128xf32, #tpu.memory_space<vmem>>, vector<8x128xf32>,
    return
  }
  func.func @transform_0(%arg0: i32) -> (i32, i32) {
    %c0_i32 = arith.constant 0 : i32
    %c0_i32_0 = arith.constant 0 : i32
    return %arg0, %c0_i32 : i32, i32
  }
  func.func @transform_1(%arg0: i32) -> (i32, i32) {
    %c0_i32 = arith.constant 0 : i32
    %c0_i32_0 = arith.constant 0 : i32
    return %arg0, %c0_i32 : i32, i32
  }
  func.func @transform_2(%arg0: i32) -> (i32, i32) {
    %c0_i32 = arith.constant 0 : i32
    %c0_i32_0 = arith.constant 0 : i32
    %c0_i32_1 = arith.constant 0 : i32
    return %c0_i32, %c0_i32_0 : i32, i32
  }
  func.func @transform_3(%arg0: i32) -> (i32, i32) {
    %c0_i32 = arith.constant 0 : i32
    %c0_i32_0 = arith.constant 0 : i32
    %c0_i32_1 = arith.constant 0 : i32
    return %c0_i32, %c0_i32_0 : i32, i32
  }
  func.func @transform_4(%arg0: i32) -> (i32, i32) {
    %c0_i32 = arith.constant 0 : i32
    %c0_i32_0 = arith.constant 0 : i32
    %c0_i32_1 = arith.constant 0 : i32
    return %c0_i32, %c0_i32_0 : i32, i32
  }
  func.func @transform_5(%arg0: i32) -> (i32, i32) {
    %c0_i32 = arith.constant 0 : i32
    %c0_i32_0 = arith.constant 0 : i32
    %c0_i32_1 = arith.constant 0 : i32
    return %c0_i32, %c0_i32_0 : i32, i32
  }
  func.func @transform_6(%arg0: i32) -> (i32, i32) {
    %c0_i32 = arith.constant 0 : i32
    %c0_i32_0 = arith.constant 0 : i32
    %c0_i32_1 = arith.constant 0 : i32
    return %c0_i32, %c0_i32_0 : i32, i32
  }
  func.func @transform_7(%arg0: i32) -> (i32, i32) {
    %c0_i32 = arith.constant 0 : i32
    %c0_i32_0 = arith.constant 0 : i32
    return %arg0, %c0_i32 : i32, i32
  }
}

</mosaic_0001>

<llo_original>
// kernel: fused_forward.1
$region0: #{fused_forward.1}
  #allocation0 [shape = 'u32[]', space=smem, size = 0x4, offset = 0x4, fixed_abs, tag = 'smem constant byte address 0x4 - core index']
  #allocation1 [shape = 'u32[144,128]{1,0:T(1,128)}', space=vmem, size = 0x12000, scoped, tag = 'internal scratch']
  %s0 = inlined_call_operand.vmem [shape: f32[16,16], index: 0, kind: input, shape index: {}]
  %s1 = inlined_call_operand.vmem [shape: f32[16,8], index: 1, kind: input, shape index: {}]
  %s2 = inlined_call_operand.hbm [shape: f32[16,128], index: 2, kind: input, shape index: {}]
  %s3 = inlined_call_operand.vmem [shape: f32[8,128], index: 3, kind: input, shape index: {}]
  %s4 = inlined_call_operand.vmem [shape: f32[1,128], index: 4, kind: input, shape index: {}]
  %s5 = inlined_call_operand.hbm [shape: f32[128,128], index: 5, kind: input, shape index: {}]
  %s6 = inlined_call_operand.hbm [shape: f32[128,128], index: 6, kind: input, shape index: {}]
  %s7 = inlined_call_operand.hbm [shape: f32[16,128], index: 7, kind: output, shape index: {}]
  %s8 = sld [smem:[#allocation0]]
  $region73: #{fused_forward.1} parent=0
    _
  %s10 = ssub.s32 1, %s8
  %s11 = scalar_select 0, %s10, %s8
  $region1: #{fused_forward.1} parent=0
    #allocation2 [shape = 'u8[8192]{0}', space=vmem, size = 0x2000, scoped, tag = 'input window, operand 2, single buffered']
    #allocation3 [shape = 's32[2]{0}', space=sflag, size = 0x8, scoped, tag = 'scoped memory for fused_forward.1']
    #allocation4 [shape = 's32[2]{0}', space=sflag, size = 0x8, scoped, tag = 'scoped memory for fused_forward.1']
    #allocation5 [shape = 'u8[65536]{0}', space=vmem, size = 0x10000, scoped, tag = 'input window, operand 5, single buffered']
    #allocation6 [shape = 's32[1]{0}', space=sflag, size = 0x4, scoped, tag = 'scoped memory for fused_forward.1']
    #allocation7 [shape = 'u8[65536]{0}', space=vmem, size = 0x10000, scoped, tag = 'input window, operand 6, single buffered']
    #allocation8 [shape = 'u8[8192]{0}', space=vmem, size = 0x2000, scoped, tag = 'output window, operand 0']
    %12 = vsyncpa [#allocation3], 0
    %13 = vsyncpa [#allocation6], 0
    %14 = vsyncpa [#allocation4], 0
    %s15 = scalar_lea.sflag [#allocation4], 1
    %16 = vsyncpa %s15, 0
    loop: start=0, step=1, limit=4
    $region2: #{fused_forward.1} parent=1 // loop_pre_header
      _
    $region3: #{fused_forward.1} parent=1 // loop_header
      %s18 = sphi 0, %s22
      %p19 = scmp.ge.s32.totalorder %s18, 4
      %s28 = sphi 0, %s30
      %s31 = sphi 0, %s28
      %s32 = sphi 0, %s31
      %s48 = sphi 0, %s32
      %s54 = sphi 0, %s56
      %s57 = sphi 0, %s54
      %s58 = sphi 0, %s57
      %s74 = sphi 0, %s58
      %s78 = sphi 0, %s78
      %s80 = sphi 0, %s78
      %s81 = sphi 0, %s80
      %s95 = sphi 0, %s81
      %s99 = sphi 0, %s99
      %s101 = sphi 0, %s99
      %s102 = sphi 0, %s101
      %s116 = sphi 0, %s102
      %s120 = sphi 0, %s120
      %s122 = sphi 0, %s120
      %s123 = sphi 0, %s122
      %s137 = sphi 0, %s123
      %s141 = sphi 0, %s141
      %s143 = sphi 0, %s141
      %s144 = sphi 0, %s143
      %s158 = sphi 0, %s144
      %s162 = sphi 0, %s162
      %s164 = sphi 0, %s162
      %s165 = sphi 0, %s164
      %s179 = sphi 0, %s165
      %s185 = sphi 0, %s187
      %s188 = sphi 0, %s185
      %s189 = sphi 0, %s188
      %s205 = sphi 0, %s189
    $region4: #{fused_forward.1} parent=1 // loop_header_branch
      %21 = sbr.rel (%p19) target = $region8
    $region5: #{fused_forward.1} parent=1 // loop_body
      %s23 = ssub.s32 %s18, 1
      %s24 = ssub.s32 %s18, 2
      %s25 = sadd.s32 %s18, 1
      %s26 = ssub.s32 %s18, %s25
      %p27 = scmp.eq.s32.totalorder %s26, 0
      %s29 = sadd.s32 %s28, 1
      %s30 = scalar_select %p27, %s28, %s29
      %p33 = pneg %p27
      %p34 = scmp.eq.s32.totalorder %s18, 1
      %p35 = por %p33, %p34
      %p36 = scmp.ne.s32.totalorder %s28, %s31
      %p37 = scmp.eq.s32.totalorder %s18, 0
      %p38 = por %p36, %p37
      %p39 = scmp.ne.s32.totalorder %s28, %s31
      %p40 = scmp.eq.s32.totalorder %s23, 1
      %p41 = por %p39, %p40
      %p42 = scmp.ne.s32.totalorder %s31, %s32
      %p43 = scmp.eq.s32.totalorder %s23, 0
      %p44 = por %p42, %p43
      %p45 = scmp.ne.s32.totalorder %s31, %s32
      %p46 = scmp.eq.s32.totalorder %s24, 1
      %p47 = por %p45, %p46
      %p49 = scmp.ne.s32.totalorder %s32, %s48
      %p50 = scmp.eq.s32.totalorder %s24, 0
      %p51 = por %p49, %p50
      %s52 = ssub.s32 %s18, %s25
      %p53 = scmp.eq.s32.totalorder %s52, 0
      %s55 = sadd.s32 %s54, 1
      %s56 = scalar_select %p53, %s54, %s55
      %p59 = pneg %p53
      %p60 = scmp.eq.s32.totalorder %s18, 1
      %p61 = por %p59, %p60
      %p62 = scmp.ne.s32.totalorder %s54, %s57
      %p63 = scmp.eq.s32.totalorder %s18, 0
      %p64 = por %p62, %p63
      %p65 = scmp.ne.s32.totalorder %s54, %s57
      %p66 = scmp.eq.s32.totalorder %s23, 1
      %p67 = por %p65, %p66
      %p68 = scmp.ne.s32.totalorder %s57, %s58
      %p69 = scmp.eq.s32.totalorder %s23, 0
      %p70 = por %p68, %p69
      %p71 = scmp.ne.s32.totalorder %s57, %s58
      %p72 = scmp.eq.s32.totalorder %s24, 1
      %p73 = por %p71, %p72
      %p75 = scmp.ne.s32.totalorder %s58, %s74
      %p76 = scmp.eq.s32.totalorder %s24, 0
      %p77 = por %p75, %p76
      %s79 = sadd.s32 %s78, 1
      %p82 = scmp.eq.s32.totalorder %s18, 1
      %p83 = scmp.ne.s32.totalorder %s78, %s80
      %p84 = scmp.eq.s32.totalorder %s18, 0
      %p85 = por %p83, %p84
      %p86 = scmp.ne.s32.totalorder %s78, %s80
      %p87 = scmp.eq.s32.totalorder %s23, 1
      %p88 = por %p86, %p87
      %p89 = scmp.ne.s32.totalorder %s80, %s81
      %p90 = scmp.eq.s32.totalorder %s23, 0
      %p91 = por %p89, %p90
      %p92 = scmp.ne.s32.totalorder %s80, %s81
      %p93 = scmp.eq.s32.totalorder %s24, 1
      %p94 = por %p92, %p93
      %p96 = scmp.ne.s32.totalorder %s81, %s95
      %p97 = scmp.eq.s32.totalorder %s24, 0
      %p98 = por %p96, %p97
      %s100 = sadd.s32 %s99, 1
      %p103 = scmp.eq.s32.totalorder %s18, 1
      %p104 = scmp.ne.s32.totalorder %s99, %s101
      %p105 = scmp.eq.s32.totalorder %s18, 0
      %p106 = por %p104, %p105
      %p107 = scmp.ne.s32.totalorder %s99, %s101
      %p108 = scmp.eq.s32.totalorder %s23, 1
      %p109 = por %p107, %p108
      %p110 = scmp.ne.s32.totalorder %s101, %s102
      %p111 = scmp.eq.s32.totalorder %s23, 0
      %p112 = por %p110, %p111
      %p113 = scmp.ne.s32.totalorder %s101, %s102
      %p114 = scmp.eq.s32.totalorder %s24, 1
      %p115 = por %p113, %p114
      %p117 = scmp.ne.s32.totalorder %s102, %s116
      %p118 = scmp.eq.s32.totalorder %s24, 0
      %p119 = por %p117, %p118
      %s121 = sadd.s32 %s120, 1
      %p124 = scmp.eq.s32.totalorder %s18, 1
      %p125 = scmp.ne.s32.totalorder %s120, %s122
      %p126 = scmp.eq.s32.totalorder %s18, 0
      %p127 = por %p125, %p126
      %p128 = scmp.ne.s32.totalorder %s120, %s122
      %p129 = scmp.eq.s32.totalorder %s23, 1
      %p130 = por %p128, %p129
      %p131 = scmp.ne.s32.totalorder %s122, %s123
      %p132 = scmp.eq.s32.totalorder %s23, 0
      %p133 = por %p131, %p132
      %p134 = scmp.ne.s32.totalorder %s122, %s123
      %p135 = scmp.eq.s32.totalorder %s24, 1
      %p136 = por %p134, %p135
      %p138 = scmp.ne.s32.totalorder %s123, %s137
      %p139 = scmp.eq.s32.totalorder %s24, 0
      %p140 = por %p138, %p139
      %s142 = sadd.s32 %s141, 1
      %p145 = scmp.eq.s32.totalorder %s18, 1
      %p146 = scmp.ne.s32.totalorder %s141, %s143
      %p147 = scmp.eq.s32.totalorder %s18, 0
      %p148 = por %p146, %p147
      %p149 = scmp.ne.s32.totalorder %s141, %s143
      %p150 = scmp.eq.s32.totalorder %s23, 1
      %p151 = por %p149, %p150
      %p152 = scmp.ne.s32.totalorder %s143, %s144
      %p153 = scmp.eq.s32.totalorder %s23, 0
      %p154 = por %p152, %p153
      %p155 = scmp.ne.s32.totalorder %s143, %s144
      %p156 = scmp.eq.s32.totalorder %s24, 1
      %p157 = por %p155, %p156
      %p159 = scmp.ne.s32.totalorder %s144, %s158
      %p160 = scmp.eq.s32.totalorder %s24, 0
      %p161 = por %p159, %p160
      %s163 = sadd.s32 %s162, 1
      %p166 = scmp.eq.s32.totalorder %s18, 1
      %p167 = scmp.ne.s32.totalorder %s162, %s164
      %p168 = scmp.eq.s32.totalorder %s18, 0
      %p169 = por %p167, %p168
      %p170 = scmp.ne.s32.totalorder %s162, %s164
      %p171 = scmp.eq.s32.totalorder %s23, 1
      %p172 = por %p170, %p171
      %p173 = scmp.ne.s32.totalorder %s164, %s165
      %p174 = scmp.eq.s32.totalorder %s23, 0
      %p175 = por %p173, %p174
      %p176 = scmp.ne.s32.totalorder %s164, %s165
      %p177 = scmp.eq.s32.totalorder %s24, 1
      %p178 = por %p176, %p177
      %p180 = scmp.ne.s32.totalorder %s165, %s179
      %p181 = scmp.eq.s32.totalorder %s24, 0
      %p182 = por %p180, %p181
      %s183 = ssub.s32 %s18, %s25
      %p184 = scmp.eq.s32.totalorder %s183, 0
      %s186 = sadd.s32 %s185, 1
      %s187 = scalar_select %p184, %s185, %s186
      %p190 = pneg %p184
      %p191 = scmp.eq.s32.totalorder %s18, 1
      %p192 = por %p190, %p191
      %p193 = scmp.ne.s32.totalorder %s185, %s188
      %p194 = scmp.eq.s32.totalorder %s18, 0
      %p195 = por %p193, %p194
      %p196 = scmp.ne.s32.totalorder %s185, %s188
      %p197 = scmp.eq.s32.totalorder %s23, 1
      %p198 = por %p196, %p197
      %p199 = scmp.ne.s32.totalorder %s188, %s189
      %p200 = scmp.eq.s32.totalorder %s23, 0
      %p201 = por %p199, %p200
      %p202 = scmp.ne.s32.totalorder %s188, %s189
      %p203 = scmp.eq.s32.totalorder %s24, 1
      %p204 = por %p202, %p203
      %p206 = scmp.ne.s32.totalorder %s189, %s205
      %p207 = scmp.eq.s32.totalorder %s24, 0
      %p208 = por %p206, %p207
      %p209 = scmp.le.s32.totalorder 1, %s18
      %p210 = scmp.lt.s32.totalorder %s18, 3
      %p211 = pnand %p209, %p210
      %p212 = pneg %p211
      // Predicated region
      $region9: #{fused_forward.1} parent=5 // pred_check
        _
      $region10: #{fused_forward.1} parent=5 // pred_check_branch
        %214 = sbr.rel (%p211) target = $region12
      $region11: #{fused_forward.1} parent=5 // pred_region
        %s215 = ssub.s32 %s18, 1
        // Predicated region
        $region13: #{fused_forward.1} parent=11 // pred_check
          %p216 = pneg %p91
        $region14: #{fused_forward.1} parent=11 // pred_check_branch
          %218 = sbr.rel (%p216) target = $region16
        $region15: #{fused_forward.1} parent=11 // pred_region
          %s220 = ssub.s32 256, 256
          %221 = vsyncadd [#allocation3], %s220
          %s222 = sshll.u32 [#allocation2], 4
          %s223 = int_to_ptr.vmem [resolvable:$true] %s222
          %228 = dma.hbm_to_vmem [thread:$0]  %s2, 256, %s223, [#allocation3], 128, 128, 8
        $region16: #{fused_forward.1} parent=11 // pred_fallthru
          _
        // Predicated region
        $region17: #{fused_forward.1} parent=11 // pred_check
          %p229 = pneg %p112
        $region18: #{fused_forward.1} parent=11 // pred_check_branch
          %231 = sbr.rel (%p229) target = $region20
        $region19: #{fused_forward.1} parent=11 // pred_region
          _
        $region20: #{fused_forward.1} parent=11 // pred_fallthru
          _
        // Predicated region
        $region21: #{fused_forward.1} parent=11 // pred_check
          %p232 = pneg %p133
        $region22: #{fused_forward.1} parent=11 // pred_check_branch
          %234 = sbr.rel (%p232) target = $region24
        $region23: #{fused_forward.1} parent=11 // pred_region
          _
        $region24: #{fused_forward.1} parent=11 // pred_fallthru
          _
        // Predicated region
        $region25: #{fused_forward.1} parent=11 // pred_check
          %p235 = pneg %p154
        $region26: #{fused_forward.1} parent=11 // pred_check_branch
          %237 = sbr.rel (%p235) target = $region28
        $region27: #{fused_forward.1} parent=11 // pred_region
          %s239 = ssub.s32 2048, 2048
          %240 = vsyncadd [#allocation6], %s239
          %s241 = sshll.u32 [#allocation5], 4
          %s242 = int_to_ptr.vmem [resolvable:$true] %s241
          %247 = dma.hbm_to_vmem [thread:$0]  %s5, 2048, %s242, [#allocation6], 128, 128, 8
        $region28: #{fused_forward.1} parent=11 // pred_fallthru
          _
        // Predicated region
        $region29: #{fused_forward.1} parent=11 // pred_check
          %p248 = pneg %p175
        $region30: #{fused_forward.1} parent=11 // pred_check_branch
          %250 = sbr.rel (%p248) target = $region32
        $region31: #{fused_forward.1} parent=11 // pred_region
          %s252 = ssub.s32 2048, 2048
          %253 = vsyncadd [#allocation6], %s252
          %s254 = sshll.u32 [#allocation7], 4
          %s255 = int_to_ptr.vmem [resolvable:$true] %s254
          %260 = dma.hbm_to_vmem [thread:$0]  %s6, 2048, %s255, [#allocation6], 128, 128, 8
        $region32: #{fused_forward.1} parent=11 // pred_fallthru
          _
      $region12: #{fused_forward.1} parent=5 // pred_fallthru
        _
      %p261 = scmp.lt.s32.totalorder %s18, 2
      // Predicated region
      $region33: #{fused_forward.1} parent=5 // pred_check
        %p262 = pneg %p261
      $region34: #{fused_forward.1} parent=5 // pred_check_branch
        %264 = sbr.rel (%p262) target = $region36
      $region35: #{fused_forward.1} parent=5 // pred_region
        // Predicated region
        $region37: #{fused_forward.1} parent=35 // pred_check
          %p265 = pneg %p38
        $region38: #{fused_forward.1} parent=35 // pred_check_branch
          %267 = sbr.rel (%p265) target = $region40
        $region39: #{fused_forward.1} parent=35 // pred_region
          %p268 = scmp.lt.s32.totalorder %s18, 1
          %s269 = scalar_select %p268, %s18, 1
          %s270 = smul.addr %s269, 8
          %s271 = scalar_lea.vmem %s0, %s270
        $region40: #{fused_forward.1} parent=35 // pred_fallthru
          _
        // Predicated region
        $region41: #{fused_forward.1} parent=35 // pred_check
          %p272 = pneg %p64
        $region42: #{fused_forward.1} parent=35 // pred_check_branch
          %274 = sbr.rel (%p272) target = $region44
        $region43: #{fused_forward.1} parent=35 // pred_region
          %p275 = scmp.lt.s32.totalorder %s18, 1
          %s276 = scalar_select %p275, %s18, 1
          %s277 = smul.addr %s276, 8
          %s278 = scalar_lea.vmem %s1, %s277
        $region44: #{fused_forward.1} parent=35 // pred_fallthru
          _
      $region36: #{fused_forward.1} parent=5 // pred_fallthru
        _
      %p279 = scmp.le.s32.totalorder 1, %s18
      %p280 = scmp.lt.s32.totalorder %s18, 3
      %p281 = pnand %p279, %p280
      %p282 = pneg %p281
      // Predicated region
      $region45: #{fused_forward.1} parent=5 // pred_check
        _
      $region46: #{fused_forward.1} parent=5 // pred_check_branch
        %284 = sbr.rel (%p281) target = $region48
      $region47: #{fused_forward.1} parent=5 // pred_region
        %s285 = ssub.s32 %s18, 1
        // Predicated region
        $region49: #{fused_forward.1} parent=47 // pred_check
          %p286 = pneg %p91
        $region50: #{fused_forward.1} parent=47 // pred_check_branch
          %288 = sbr.rel (%p286) target = $region52
        $region51: #{fused_forward.1} parent=47 // pred_region
          %289 = dma.done [#allocation3], 256
        $region52: #{fused_forward.1} parent=47 // pred_fallthru
          _
        // Predicated region
        $region53: #{fused_forward.1} parent=47 // pred_check
          %p290 = pneg %p154
        $region54: #{fused_forward.1} parent=47 // pred_check_branch
          %292 = sbr.rel (%p290) target = $region56
        $region55: #{fused_forward.1} parent=47 // pred_region
          %293 = dma.done [#allocation6], 2048
        $region56: #{fused_forward.1} parent=47 // pred_fallthru
          _
        // Predicated region
        $region57: #{fused_forward.1} parent=47 // pred_check
          %p294 = pneg %p175
        $region58: #{fused_forward.1} parent=47 // pred_check_branch
          %296 = sbr.rel (%p294) target = $region60
        $region59: #{fused_forward.1} parent=47 // pred_region
          %297 = dma.done [#allocation6], 2048
        $region60: #{fused_forward.1} parent=47 // pred_fallthru
          _
        %p298 = scmp.lt.s32.totalorder %s23, 1
        %s299 = scalar_select %p298, %s23, 1
        %s300 = smul.addr %s299, 8
        %s301 = scalar_lea.vmem %s0, %s300
        %p302 = pneg %p44
        %p303 = pneg %p41
        %p304 = scmp.lt.s32.totalorder %s23, 1
        %s305 = scalar_select %p304, %s23, 1
        %s306 = smul.addr %s305, 8
        %s307 = scalar_lea.vmem %s1, %s306
        %p308 = pneg %p70
        %p309 = pneg %p67
        %p310 = pneg %p91
        %p311 = pneg %p88
        %p312 = pneg %p112
        %p313 = pneg %p109
        %p314 = pneg %p133
        %p315 = pneg %p130
        %p316 = pneg %p154
        %p317 = pneg %p151
        %p318 = pneg %p175
        %p319 = pneg %p172
        %p320 = pneg %p201
        %p321 = pneg %p198
        %s322 = sand.u32 %s188, 1
        %s323 = scalar_lea.sflag [#allocation4], %s322
        %s324 = sand.u32 %s188, 1
        %s325 = smul.addr %s324, 8
        %s326 = scalar_lea.vmem [#allocation8], %s325
        %p327 = scmp.lt.s32.totalorder %s23, 1
        %s328 = scalar_select %p327, %s23, 1
        %s329 = smul.addr %s328, 8
        %s330 = scalar_lea.vmem %s0, %s329
        %p331 = scmp.lt.s32.totalorder %s23, 1
        %s332 = scalar_select %p331, %s23, 1
        %s333 = smul.addr %s332, 8
        %s334 = scalar_lea.vmem %s1, %s333
        %v335 = vld [vmem:[%s330] sm:$0xff]
        %v336 = vld [vmem:[#allocation2] sm:$0xff]
        %v337 = vld [vmem:[#allocation2 + $0x8] sm:$0xff]
        %v338 = vld [vmem:[%s334] sm:$0xff]
        %v339 = vld [vmem:[%s3] sm:$0xff]
        %vm340 = vcmask 64512
        %v342 = vsel %vm340, %v338, 0
        %344 = vmatprep.subr.mxu0 0.0
        %345 = vmatpush1.msra.mxu0 0.0
        %346 = vmatprep.subr.mxu0 0.0
        %347 = vmatpush1.msra.mxu0 0.0
        %348 = vmatprep.subr.mxu0 0.0
        %349 = vmatpush1.msra.mxu0 0.0
        %350 = vmatprep.subr.mxu0 0.0
        %351 = vmatpush1.msra.mxu0 0.0
        %352 = vmatprep.subr.mxu0 0.0
        %353 = vmatpush1.msra.mxu0 0.0
        %354 = vmatprep.subr.mxu0 0.0
        %355 = vmatpush1.msra.mxu0 0.0
        %356 = vmatprep.subr.mxu0 0.0
        %357 = vmatpush1.msra.mxu0 0.0
        %358 = vmatprep.subr.mxu0 0.0
        %359 = vmatpush1.msra.mxu0 0.0
        %360 = vmatprep.subr.mxu0 0.0
        %361 = vmatpush1.msra.mxu0 0.0
        %362 = vmatprep.subr.mxu0 0.0
        %363 = vmatpush1.msra.mxu0 0.0
        %364 = vmatprep.subr.mxu0 0.0
        %365 = vmatpush1.msra.mxu0 0.0
        %366 = vmatprep.subr.mxu0 0.0
        %367 = vmatpush1.msra.mxu0 0.0
        %368 = vmatprep.subr.mxu0 0.0
        %369 = vmatpush1.msra.mxu0 0.0
        %370 = vmatprep.subr.mxu0 0.0
        %371 = vmatpush1.msra.mxu0 0.0
        %372 = vmatprep.subr.mxu0 0.0
        %373 = vmatpush1.msra.mxu0 0.0
        %374 = vmatprep.subr.mxu0 0.0
        %375 = vmatpush1.msra.mxu0 %v339
        %376 = vmatprep.subr.mxu0 0.0
        %377 = vmatpush2.msra.mxu0 0.0
        %378 = vmatprep.subr.mxu0 0.0
        %379 = vmatpush2.msra.mxu0 0.0
        %380 = vmatprep.subr.mxu0 0.0
        %381 = vmatpush2.msra.mxu0 0.0
        %382 = vmatprep.subr.mxu0 0.0
        %383 = vmatpush2.msra.mxu0 0.0
        %384 = vmatprep.subr.mxu0 0.0
        %385 = vmatpush2.msra.mxu0 0.0
        %386 = vmatprep.subr.mxu0 0.0
        %387 = vmatpush2.msra.mxu0 0.0
        %388 = vmatprep.subr.mxu0 0.0
        %389 = vmatpush2.msra.mxu0 0.0
        %390 = vmatprep.subr.mxu0 0.0
        %391 = vmatpush2.msra.mxu0 0.0
        %392 = vmatprep.subr.mxu0 0.0
        %393 = vmatpush2.msra.mxu0 0.0
        %394 = vmatprep.subr.mxu0 0.0
        %395 = vmatpush2.msra.mxu0 0.0
        %396 = vmatprep.subr.mxu0 0.0
        %397 = vmatpush2.msra.mxu0 0.0
        %398 = vmatprep.subr.mxu0 0.0
        %399 = vmatpush2.msra.mxu0 0.0
        %400 = vmatprep.subr.mxu0 0.0
        %401 = vmatpush2.msra.mxu0 0.0
        %402 = vmatprep.subr.mxu0 0.0
        %403 = vmatpush2.msra.mxu0 0.0
        %404 = vmatprep.subr.mxu0 0.0
        %405 = vmatpush2.msra.mxu0 0.0
        %406 = vmatprep.subr.mxu0 0.0
        %407 = vmatpush2.msra.mxu0 0.0
        %408 = vmatprep.mubr.f32.mxu0 0.0
        %409 = vmatmul.mubr.f32.gmra.mxu0 %v342
        %v410 = vpop.f32.mrf.mxu0
        %v411 = vadd.f32 0.0, %v410
        %v412 = vpop.f32.mrf.mxu0
        %413 = vdwg.mxu0
        %vm414 = vcmask 130048
        %v416 = vsel %vm414, %v335, 0
        %418 = vmatprep.subr.mxu0 0.0
        %419 = vmatpush1.msra.mxu0 0.0
        %420 = vmatprep.subr.mxu0 0.0
        %421 = vmatpush1.msra.mxu0 0.0
        %422 = vmatprep.subr.mxu0 0.0
        %423 = vmatpush1.msra.mxu0 0.0
        %424 = vmatprep.subr.mxu0 0.0
        %425 = vmatpush1.msra.mxu0 0.0
        %426 = vmatprep.subr.mxu0 0.0
        %427 = vmatpush1.msra.mxu0 0.0
        %428 = vmatprep.subr.mxu0 0.0
        %429 = vmatpush1.msra.mxu0 0.0
        %430 = vmatprep.subr.mxu0 0.0
        %431 = vmatpush1.msra.mxu0 0.0
        %432 = vmatprep.subr.mxu0 0.0
        %433 = vmatpush1.msra.mxu0 0.0
        %434 = vmatprep.subr.mxu0 0.0
        %435 = vmatpush1.msra.mxu0 0.0
        %436 = vmatprep.subr.mxu0 0.0
        %437 = vmatpush1.msra.mxu0 0.0
        %438 = vmatprep.subr.mxu0 0.0
        %439 = vmatpush1.msra.mxu0 0.0
        %440 = vmatprep.subr.mxu0 0.0
        %441 = vmatpush1.msra.mxu0 0.0
        %442 = vmatprep.subr.mxu0 0.0
        %443 = vmatpush1.msra.mxu0 0.0
        %444 = vmatprep.subr.mxu0 0.0
        %445 = vmatpush1.msra.mxu0 0.0
        %446 = vmatprep.subr.mxu0 0.0
        %447 = vmatpush1.msra.mxu0 %v337
        %448 = vmatprep.subr.mxu0 0.0
        %449 = vmatpush1.msra.mxu0 %v336
        %450 = vmatprep.subr.mxu0 0.0
        %451 = vmatpush2.msra.mxu0 0.0
        %452 = vmatprep.subr.mxu0 0.0
        %453 = vmatpush2.msra.mxu0 0.0
        %454 = vmatprep.subr.mxu0 0.0
        %455 = vmatpush2.msra.mxu0 0.0
        %456 = vmatprep.subr.mxu0 0.0
        %457 = vmatpush2.msra.mxu0 0.0
        %458 = vmatprep.subr.mxu0 0.0
        %459 = vmatpush2.msra.mxu0 0.0
        %460 = vmatprep.subr.mxu0 0.0
        %461 = vmatpush2.msra.mxu0 0.0
        %462 = vmatprep.subr.mxu0 0.0
        %463 = vmatpush2.msra.mxu0 0.0
        %464 = vmatprep.subr.mxu0 0.0
        %465 = vmatpush2.msra.mxu0 0.0
        %466 = vmatprep.subr.mxu0 0.0
        %467 = vmatpush2.msra.mxu0 0.0
        %468 = vmatprep.subr.mxu0 0.0
        %469 = vmatpush2.msra.mxu0 0.0
        %470 = vmatprep.subr.mxu0 0.0
        %471 = vmatpush2.msra.mxu0 0.0
        %472 = vmatprep.subr.mxu0 0.0
        %473 = vmatpush2.msra.mxu0 0.0
        %474 = vmatprep.subr.mxu0 0.0
        %475 = vmatpush2.msra.mxu0 0.0
        %476 = vmatprep.subr.mxu0 0.0
        %477 = vmatpush2.msra.mxu0 0.0
        %478 = vmatprep.subr.mxu0 0.0
        %479 = vmatpush2.msra.mxu0 0.0
        %480 = vmatprep.subr.mxu0 0.0
        %481 = vmatpush2.msra.mxu0 0.0
        %482 = vmatprep.mubr.f32.mxu0 0.0
        %483 = vmatmul.mubr.f32.gmra.mxu0 %v416
        %v484 = vpop.f32.mrf.mxu0
        %v485 = vadd.f32 %v411, %v484
        %v486 = vpop.f32.mrf.mxu0
        %487 = vdwg.mxu0
        %v488 = vld [vmem:[%s4] sm:$0x1]
        %v490 = vlaneseq
        %v491 = vshrl.u32 %v490, 7
        %v492 = vsub.s32 0, %v491
        %v493 = vrot.slane %v488, %v492
        %v495 = vadd.f32 %v485, %v493
        %v496 = vmax.f32 %v495, 0.0
        %v497 = vld [vmem:[#allocation5] sm:$0xff]
        %v498 = vld [vmem:[#allocation5 + $0x8] sm:$0xff]
        %v499 = vld [vmem:[#allocation5 + $0x10] sm:$0xff]
        %v500 = vld [vmem:[#allocation5 + $0x18] sm:$0xff]
        %v501 = vld [vmem:[#allocation5 + $0x20] sm:$0xff]
        %v502 = vld [vmem:[#allocation5 + $0x28] sm:$0xff]
        %v503 = vld [vmem:[#allocation5 + $0x30] sm:$0xff]
        %v504 = vld [vmem:[#allocation5 + $0x38] sm:$0xff]
        %v505 = vld [vmem:[#allocation5 + $0x40] sm:$0xff]
        %v506 = vld [vmem:[#allocation5 + $0x48] sm:$0xff]
        %v507 = vld [vmem:[#allocation5 + $0x50] sm:$0xff]
        %v508 = vld [vmem:[#allocation5 + $0x58] sm:$0xff]
        %v509 = vld [vmem:[#allocation5 + $0x60] sm:$0xff]
        %v510 = vld [vmem:[#allocation5 + $0x68] sm:$0xff]
        %v511 = vld [vmem:[#allocation5 + $0x70] sm:$0xff]
        %v512 = vld [vmem:[#allocation5 + $0x78] sm:$0xff]
        %513 = vmatprep.subr.mxu0 0.0
        %514 = vmatpush1.msra.mxu0 %v512
        %515 = vmatprep.subr.mxu0 0.0
        %516 = vmatpush1.msra.mxu0 %v511
        %517 = vmatprep.subr.mxu0 0.0
        %518 = vmatpush1.msra.mxu0 %v510
        %519 = vmatprep.subr.mxu0 0.0
        %520 = vmatpush1.msra.mxu0 %v509
        %521 = vmatprep.subr.mxu0 0.0
        %522 = vmatpush1.msra.mxu0 %v508
        %523 = vmatprep.subr.mxu0 0.0
        %524 = vmatpush1.msra.mxu0 %v507
        %525 = vmatprep.subr.mxu0 0.0
        %526 = vmatpush1.msra.mxu0 %v506
        %527 = vmatprep.subr.mxu0 0.0
        %528 = vmatpush1.msra.mxu0 %v505
        %529 = vmatprep.subr.mxu0 0.0
        %530 = vmatpush1.msra.mxu0 %v504
        %531 = vmatprep.subr.mxu0 0.0
        %532 = vmatpush1.msra.mxu0 %v503
        %533 = vmatprep.subr.mxu0 0.0
        %534 = vmatpush1.msra.mxu0 %v502
        %535 = vmatprep.subr.mxu0 0.0
        %536 = vmatpush1.msra.mxu0 %v501
        %537 = vmatprep.subr.mxu0 0.0
        %538 = vmatpush1.msra.mxu0 %v500
        %539 = vmatprep.subr.mxu0 0.0
        %540 = vmatpush1.msra.mxu0 %v499
        %541 = vmatprep.subr.mxu0 0.0
        %542 = vmatpush1.msra.mxu0 %v498
        %543 = vmatprep.subr.mxu0 0.0
        %544 = vmatpush1.msra.mxu0 %v497
        %545 = vmatprep.subr.mxu0 0.0
        %546 = vmatpush2.msra.mxu0 0.0
        %547 = vmatprep.subr.mxu0 0.0
        %548 = vmatpush2.msra.mxu0 0.0
        %549 = vmatprep.subr.mxu0 0.0
        %550 = vmatpush2.msra.mxu0 0.0
        %551 = vmatprep.subr.mxu0 0.0
        %552 = vmatpush2.msra.mxu0 0.0
        %553 = vmatprep.subr.mxu0 0.0
        %554 = vmatpush2.msra.mxu0 0.0
        %555 = vmatprep.subr.mxu0 0.0
        %556 = vmatpush2.msra.mxu0 0.0
        %557 = vmatprep.subr.mxu0 0.0
        %558 = vmatpush2.msra.mxu0 0.0
        %559 = vmatprep.subr.mxu0 0.0
        %560 = vmatpush2.msra.mxu0 0.0
        %561 = vmatprep.subr.mxu0 0.0
        %562 = vmatpush2.msra.mxu0 0.0
        %563 = vmatprep.subr.mxu0 0.0
        %564 = vmatpush2.msra.mxu0 0.0
        %565 = vmatprep.subr.mxu0 0.0
        %566 = vmatpush2.msra.mxu0 0.0
        %567 = vmatprep.subr.mxu0 0.0
        %568 = vmatpush2.msra.mxu0 0.0
        %569 = vmatprep.subr.mxu0 0.0
        %570 = vmatpush2.msra.mxu0 0.0
        %571 = vmatprep.subr.mxu0 0.0
        %572 = vmatpush2.msra.mxu0 0.0
        %573 = vmatprep.subr.mxu0 0.0
        %574 = vmatpush2.msra.mxu0 0.0
        %575 = vmatprep.subr.mxu0 0.0
        %576 = vmatpush2.msra.mxu0 0.0
        %577 = vmatprep.mubr.f32.mxu0 0.0
        %578 = vmatmul.mubr.f32.gmra.mxu0 %v496
        %v579 = vpop.f32.mrf.mxu0
        %v580 = vadd.f32 0.0, %v579
        %v581 = vpop.f32.mrf.mxu0
        %582 = vdwg.mxu0
        %v583 = vmax.f32 %v580, 0.0
        %v584 = vld [vmem:[#allocation7] sm:$0xff]
        %v585 = vld [vmem:[#allocation7 + $0x8] sm:$0xff]
        %v586 = vld [vmem:[#allocation7 + $0x10] sm:$0xff]
        %v587 = vld [vmem:[#allocation7 + $0x18] sm:$0xff]
        %v588 = vld [vmem:[#allocation7 + $0x20] sm:$0xff]
        %v589 = vld [vmem:[#allocation7 + $0x28] sm:$0xff]
        %v590 = vld [vmem:[#allocation7 + $0x30] sm:$0xff]
        %v591 = vld [vmem:[#allocation7 + $0x38] sm:$0xff]
        %v592 = vld [vmem:[#allocation7 + $0x40] sm:$0xff]
        %v593 = vld [vmem:[#allocation7 + $0x48] sm:$0xff]
        %v594 = vld [vmem:[#allocation7 + $0x50] sm:$0xff]
        %v595 = vld [vmem:[#allocation7 + $0x58] sm:$0xff]
        %v596 = vld [vmem:[#allocation7 + $0x60] sm:$0xff]
        %v597 = vld [vmem:[#allocation7 + $0x68] sm:$0xff]
        %v598 = vld [vmem:[#allocation7 + $0x70] sm:$0xff]
        %v599 = vld [vmem:[#allocation7 + $0x78] sm:$0xff]
        %600 = vmatprep.subr.mxu0 0.0
        %601 = vmatpush1.msra.mxu0 %v599
        %602 = vmatprep.subr.mxu0 0.0
        %603 = vmatpush1.msra.mxu0 %v598
        %604 = vmatprep.subr.mxu0 0.0
        %605 = vmatpush1.msra.mxu0 %v597
        %606 = vmatprep.subr.mxu0 0.0
        %607 = vmatpush1.msra.mxu0 %v596
        %608 = vmatprep.subr.mxu0 0.0
        %609 = vmatpush1.msra.mxu0 %v595
        %610 = vmatprep.subr.mxu0 0.0
        %611 = vmatpush1.msra.mxu0 %v594
        %612 = vmatprep.subr.mxu0 0.0
        %613 = vmatpush1.msra.mxu0 %v593
        %614 = vmatprep.subr.mxu0 0.0
        %615 = vmatpush1.msra.mxu0 %v592
        %616 = vmatprep.subr.mxu0 0.0
        %617 = vmatpush1.msra.mxu0 %v591
        %618 = vmatprep.subr.mxu0 0.0
        %619 = vmatpush1.msra.mxu0 %v590
        %620 = vmatprep.subr.mxu0 0.0
        %621 = vmatpush1.msra.mxu0 %v589
        %622 = vmatprep.subr.mxu0 0.0
        %623 = vmatpush1.msra.mxu0 %v588
        %624 = vmatprep.subr.mxu0 0.0
        %625 = vmatpush1.msra.mxu0 %v587
        %626 = vmatprep.subr.mxu0 0.0
        %627 = vmatpush1.msra.mxu0 %v586
        %628 = vmatprep.subr.mxu0 0.0
        %629 = vmatpush1.msra.mxu0 %v585
        %630 = vmatprep.subr.mxu0 0.0
        %631 = vmatpush1.msra.mxu0 %v584
        %632 = vmatprep.subr.mxu0 0.0
        %633 = vmatpush2.msra.mxu0 0.0
        %634 = vmatprep.subr.mxu0 0.0
        %635 = vmatpush2.msra.mxu0 0.0
        %636 = vmatprep.subr.mxu0 0.0
        %637 = vmatpush2.msra.mxu0 0.0
        %638 = vmatprep.subr.mxu0 0.0
        %639 = vmatpush2.msra.mxu0 0.0
        %640 = vmatprep.subr.mxu0 0.0
        %641 = vmatpush2.msra.mxu0 0.0
        %642 = vmatprep.subr.mxu0 0.0
        %643 = vmatpush2.msra.mxu0 0.0
        %644 = vmatprep.subr.mxu0 0.0
        %645 = vmatpush2.msra.mxu0 0.0
        %646 = vmatprep.subr.mxu0 0.0
        %647 = vmatpush2.msra.mxu0 0.0
        %648 = vmatprep.subr.mxu0 0.0
        %649 = vmatpush2.msra.mxu0 0.0
        %650 = vmatprep.subr.mxu0 0.0
        %651 = vmatpush2.msra.mxu0 0.0
        %652 = vmatprep.subr.mxu0 0.0
        %653 = vmatpush2.msra.mxu0 0.0
        %654 = vmatprep.subr.mxu0 0.0
        %655 = vmatpush2.msra.mxu0 0.0
        %656 = vmatprep.subr.mxu0 0.0
        %657 = vmatpush2.msra.mxu0 0.0
        %658 = vmatprep.subr.mxu0 0.0
        %659 = vmatpush2.msra.mxu0 0.0
        %660 = vmatprep.subr.mxu0 0.0
        %661 = vmatpush2.msra.mxu0 0.0
        %662 = vmatprep.subr.mxu0 0.0
        %663 = vmatpush2.msra.mxu0 0.0
        %664 = vmatprep.mubr.f32.mxu0 0.0
        %665 = vmatmul.mubr.f32.gmra.mxu0 %v583
        %v666 = vpop.f32.mrf.mxu0
        %v667 = vadd.f32 0.0, %v666
        %v668 = vpop.f32.mrf.mxu0
        %669 = vdwg.mxu0
        %670 = vst [vmem:[%s326] sm:$0xff] %v667
        %s671 = sand.u32 %s188, 1
        %s672 = scalar_lea.sflag [#allocation4], %s671
        %s673 = sand.u32 %s188, 1
        %s674 = smul.addr %s673, 8
        %s675 = scalar_lea.vmem [#allocation8], %s674
        // Predicated region
        $region61: #{fused_forward.1} parent=47 // pred_check
          %p676 = pneg %p198
        $region62: #{fused_forward.1} parent=47 // pred_check_branch
          %678 = sbr.rel (%p676) target = $region64
        $region63: #{fused_forward.1} parent=47 // pred_region
          %s680 = ssub.s32 128, 128
          %681 = vsyncadd %s672, %s680
          %s682 = smul.addr %s23, 128
          %s683 = scalar_lea.hbm %s7, %s682
          %s685 = sshll.u32 %s675, 4
          %s686 = int_to_ptr.vmem [resolvable:$true] %s685
          %688 = dma.vmem_to_hbm [thread:$0]  %s686, 128, %s683, %s672
        $region64: #{fused_forward.1} parent=47 // pred_fallthru
          _
      $region48: #{fused_forward.1} parent=5 // pred_fallthru
        _
      %p689 = scmp.le.s32.totalorder 2, %s18
      // Predicated region
      $region65: #{fused_forward.1} parent=5 // pred_check
        %p690 = pneg %p689
      $region66: #{fused_forward.1} parent=5 // pred_check_branch
        %692 = sbr.rel (%p690) target = $region68
      $region67: #{fused_forward.1} parent=5 // pred_region
        %s693 = ssub.s32 %s18, 2
        // Predicated region
        $region69: #{fused_forward.1} parent=67 // pred_check
          %p694 = pneg %p204
        $region70: #{fused_forward.1} parent=67 // pred_check_branch
          %696 = sbr.rel (%p694) target = $region72
        $region71: #{fused_forward.1} parent=67 // pred_region
          %s697 = sand.u32 %s189, 1
          %s698 = scalar_lea.sflag [#allocation4], %s697
          %s699 = sand.u32 %s189, 1
          %s700 = smul.addr %s699, 8
          %s701 = scalar_lea.vmem [#allocation8], %s700
          %702 = dma.done %s698, 128
        $region72: #{fused_forward.1} parent=67 // pred_fallthru
          _
      $region68: #{fused_forward.1} parent=5 // pred_fallthru
        _
    $region6: #{fused_forward.1} parent=1 // loop_footer
      %s22 = sadd.s32 1, %s18
    $region7: #{fused_forward.1} parent=1 // loop_footer_branch
      %17 = sbr.rel target = $region3
    $region8: #{fused_forward.1} parent=1 // loop_exit
      _
    %703 = vsyncpa [#allocation3], 1
    %s704 = scalar_lea.sflag [#allocation3], 1
    %705 = vsyncpa %s704, 1
    %706 = vsyncpa [#allocation6], 1
    %707 = vsyncpa [#allocation4], 1
    %s708 = scalar_lea.sflag [#allocation4], 1
    %709 = vsyncpa %s708, 1

</llo_original>
